<compile_context>
chip_gen: v7x
topology: tpu7x:2x2x1
jax: 0.10.0
libtpu: 0.0.40
codegen_flags: <defaults>
</compile_context>

<pallas_src>
import numpy as np
import jax
import jax.numpy as jnp
from jax import lax
from jax.experimental import pallas as pl
from jax.experimental.pallas import tpu as pltpu

LANE = 128        # TPU lane width (last-dim tile)
ROW_ALIGN = 8     # sublane-safe row multiple


def _round_up(x, m):
    return (x + m - 1) // m * m


def _pick_vmem_limit():
    """Per-generation scoped-VMEM budget (best effort; safe fallback)."""
    try:
        kind = jax.devices()[0].device_kind.lower()
    except Exception:
        kind = ""
    if "v5" in kind or "v6" in kind:
        return 96 * 1024 * 1024   # 128 MiB physical VMEM -> use most of it
    return 48 * 1024 * 1024       # v7x (64 MiB / TC), CPU-interpret, unknown


VMEM_LIMIT_BYTES = _pick_vmem_limit()


# ----------------------------------------------------------------------------
# Kernel 1: row-tiled  y = tanh(x @ W + b)
# ----------------------------------------------------------------------------
def _linear_tanh_kernel(x_ref, w_ref, b_ref, o_ref):
    # bf16 operands for the MXU, f32 accumulate, f32 bias-add + tanh.
    x = x_ref[...].astype(jnp.bfloat16)
    w = w_ref[...]
    y = jnp.dot(x, w, preferred_element_type=jnp.float32)
    o_ref[...] = jnp.tanh(y + b_ref[...]).astype(o_ref.dtype)


def linear_tanh(x, w, b, *, n_rows=None, block_rows=None, out_dtype=jnp.float32):
    """tanh(x[:n_rows] @ w + b), row-tiled with double-buffered BlockSpecs.

    x: (N, D) f32 (D may be any width; it is taken as a full-dim block),
    w: (D, H) with H lane-dense (multiple of 128), b: (H,).
    Partial last row-block is handled by the grid (no wrapper pad / slice copy).
    """
    n, d = x.shape
    h = w.shape[1]
    if n_rows is None:
        n_rows = n
    if block_rows is None:
        # Bigger tiles when VMEM allows (v5e/v6e), conservative on v7x.
        block_rows = 1024 if VMEM_LIMIT_BYTES >= 64 * 1024 * 1024 else 512
    tm = min(block_rows, _round_up(max(n_rows, 1), ROW_ALIGN))
    grid = (pl.cdiv(n_rows, tm),)
    # TODO(synk): for very large D/H on v7x, K-tile the matmul instead of holding
    # the full (D, H) weight double-buffered.
    flops = 2 * int(n_rows) * int(d) * int(h)
    bytes_accessed = (int(n_rows) * int(d) * int(x.dtype.itemsize)
                      + int(d) * int(h) * 2
                      + int(n_rows) * int(h) * int(jnp.dtype(out_dtype).itemsize))
    return pl.pallas_call(
        _linear_tanh_kernel,
        out_shape=jax.ShapeDtypeStruct((n_rows, h), out_dtype),
        grid=grid,
        in_specs=[
            pl.BlockSpec((tm, d), lambda i: (i, 0)),
            pl.BlockSpec((d, h), lambda i: (0, 0)),
            pl.BlockSpec((1, h), lambda i: (0, 0)),
        ],
        out_specs=pl.BlockSpec((tm, h), lambda i: (i, 0)),
        compiler_params=pltpu.CompilerParams(
            dimension_semantics=("parallel",),
            vmem_limit_bytes=VMEM_LIMIT_BYTES),
        cost_estimate=pl.CostEstimate(
            flops=flops, transcendentals=int(n_rows) * int(h),
            bytes_accessed=bytes_accessed),
    )(x, w.astype(jnp.bfloat16), b.reshape(1, h).astype(jnp.float32))


# ----------------------------------------------------------------------------
# Kernel 2: fused gather (mixed rows + ctx rows) and pooled mean, grid=(B,)
#   mixed_out[b, l] = mix_tbl[mixed_idx[b, l]]
#   ctx_out[b, l]   = aug[ctx_idx[b, l]]
#   pool_out[b]     = (sum_l aug[focus_idx[b,l]] + sum_l aug[ctx_idx[b,l]]) / len[b]
# Source tables are full-array VMEM-resident blocks; index tables live in SMEM.
# ----------------------------------------------------------------------------
def _gather_fuse_kernel(mixed_idx_ref, focus_idx_ref, ctx_idx_ref, len_ref,  # SMEM
                        aug_ref, mix_ref,                                    # VMEM
                        mixed_out_ref, ctx_out_ref, pool_out_ref):
    b = pl.program_id(0)          # top-level only (never inside pl.when)
    lf = mixed_out_ref.shape[1]
    lc = ctx_out_ref.shape[1]
    hp = pool_out_ref.shape[-1]

    acc0 = jnp.zeros((1, hp), jnp.float32)

    def focus_body(l, acc):
        mixed_out_ref[0, pl.ds(l, 1), :] = mix_ref[pl.ds(mixed_idx_ref[b, l], 1), :]
        return acc + aug_ref[pl.ds(focus_idx_ref[b, l], 1), :]

    acc = lax.fori_loop(0, lf, focus_body, acc0, unroll=(lf <= 32))

    def ctx_body(l, acc):
        row = aug_ref[pl.ds(ctx_idx_ref[b, l], 1), :]
        ctx_out_ref[0, pl.ds(l, 1), :] = row
        return acc + row

    acc = lax.fori_loop(0, lc, ctx_body, acc, unroll=(lc <= 32))

    inv = 1.0 / len_ref[b].astype(jnp.float32)   # exact division
    pool_out_ref[...] = (acc * inv).reshape(1, 1, hp)


def gather_mix_ctx_pool(aug, mix_tbl, mixed_idx, focus_idx, ctx_idx, lengths):
    """aug: (R, H) f32, mix_tbl: (F+1, H) f32; idx tables int32; lengths (B,)."""
    r, hp = aug.shape
    f1 = mix_tbl.shape[0]
    bsz, lf = mixed_idx.shape
    lc = ctx_idx.shape[1]

    out_shape = (
        jax.ShapeDtypeStruct((bsz, lf, hp), jnp.float32),
        jax.ShapeDtypeStruct((bsz, lc, hp), jnp.float32),
        jax.ShapeDtypeStruct((bsz, 1, hp), jnp.float32),
    )
    grid_spec = pltpu.PrefetchScalarGridSpec(
        num_scalar_prefetch=4,
        grid=(bsz,),
        in_specs=[
            pl.BlockSpec((r, hp), lambda b, *pref: (0, 0)),     # aug  (VMEM-resident)
            pl.BlockSpec((f1, hp), lambda b, *pref: (0, 0)),    # mix  (VMEM-resident)
        ],
        out_specs=[
            pl.BlockSpec((1, lf, hp), lambda b, *pref: (b, 0, 0)),
            pl.BlockSpec((1, lc, hp), lambda b, *pref: (b, 0, 0)),
            pl.BlockSpec((1, 1, hp), lambda b, *pref: (b, 0, 0)),
        ],
    )
    bytes_accessed = ((r + f1) * hp * 4
                      + bsz * (lf + lc + 1) * hp * 4
                      + bsz * (2 * lf + lc) * 4 + bsz * 4)
    mixed, ctx, pool = pl.pallas_call(
        _gather_fuse_kernel,
        out_shape=out_shape,
        grid_spec=grid_spec,
        compiler_params=pltpu.CompilerParams(
            dimension_semantics=("parallel",),        # v7x: B>=2 -> both TCs busy
            vmem_limit_bytes=VMEM_LIMIT_BYTES),
        cost_estimate=pl.CostEstimate(
            flops=int(bsz) * int(lf + lc) * int(hp),
            transcendentals=0,
            bytes_accessed=int(bytes_accessed)),
    )(mixed_idx, focus_idx, ctx_idx, lengths, aug, mix_tbl)
    return mixed, ctx, pool.reshape(bsz, hp)


# ----------------------------------------------------------------------------
# Synthetic sub-modules (their source is not part of the provided module code)
# ----------------------------------------------------------------------------
def path_encoder(params, srcs, srcs_pos, src_len, tgts, tgts_pos, tgt_len,
                 paths, paths_pos, path_len):
    """Embeds (token + position), masked mean-pools src/path/tgt, concatenates
    and projects to the lane-dense hidden dim with the Pallas linear+tanh kernel.
    # TODO(synk): the real PathEncoder (LSTM over path tokens) is not defined in
    # the provided source; this is a deterministic synthetic stand-in."""
    def embed_pool(tok, pos, lens, tok_emb, pos_emb):
        e = tok_emb[tok] + pos_emb[pos]                       # (N, L, in_dim)
        mask = (tok != 0).astype(jnp.float32)[..., None]      # padding_idx = 0
        denom = jnp.maximum(lens.astype(jnp.float32), 1.0)[:, None]
        return (e * mask).sum(axis=1) / denom                 # (N, in_dim)

    src_v = embed_pool(srcs, srcs_pos, src_len,
                       params["src_tgt_emb"], params["pos_emb"])
    tgt_v = embed_pool(tgts, tgts_pos, tgt_len,
                       params["src_tgt_emb"], params["pos_emb"])
    path_v = embed_pool(paths, paths_pos, path_len,
                        params["path_emb"], params["pos_emb"])
    feat = jnp.concatenate([src_v, path_v, tgt_v], axis=1)    # (N, 3*in_dim) f32
    # No wrapper-side pad/cast: the kernel takes the full 3*in_dim block width
    # and casts to bf16 internally; the weight's output dim is lane-padded.
    return linear_tanh(feat, params["path_proj_w"], params["path_proj_b"])


# ----------------------------------------------------------------------------
# Host-side (static) index tables driving the fused gather kernel
# ----------------------------------------------------------------------------
def build_index_tables(focus_n, before_n, after_n):
    """Row indices into aug = [encoded_path | split_token | 0] (and the mix table)."""
    bsz = len(focus_n)
    f_total = int(sum(focus_n))
    t_total = f_total + int(sum(before_n)) + int(sum(after_n))
    split_row = t_total            # row index of split_token in aug
    zero_row = t_total + 1         # row index of the all-zero padding row in aug

    focus_off = np.concatenate([[0], np.cumsum(focus_n)[:-1]]).astype(np.int64)
    before_off = f_total + np.concatenate([[0], np.cumsum(before_n)[:-1]]).astype(np.int64)
    after_off = (f_total + int(sum(before_n))
                 + np.concatenate([[0], np.cumsum(after_n)[:-1]]).astype(np.int64))

    ctx_n = [b + 1 + a for b, a in zip(before_n, after_n)]
    lf_max = max(focus_n)
    lc_max = max(ctx_n)

    mixed_idx = np.full((bsz, lf_max), f_total, np.int32)   # pad -> zero row of mix tbl
    focus_idx = np.full((bsz, lf_max), zero_row, np.int32)  # pad -> zero row of aug
    ctx_idx = np.full((bsz, lc_max), zero_row, np.int32)
    for b in range(bsz):
        lf, nb, na = focus_n[b], before_n[b], after_n[b]
        mixed_idx[b, :lf] = np.arange(focus_off[b], focus_off[b] + lf)
        focus_idx[b, :lf] = np.arange(focus_off[b], focus_off[b] + lf)
        ctx_idx[b, :nb] = np.arange(before_off[b], before_off[b] + nb)
        ctx_idx[b, nb] = split_row
        ctx_idx[b, nb + 1:nb + 1 + na] = np.arange(after_off[b], after_off[b] + na)

    lengths = np.maximum(
        np.array([focus_n[b] + ctx_n[b] for b in range(bsz)], np.int32), 1)
    focus_lens = np.array(focus_n, np.int32)
    ctx_lens = np.array(ctx_n, np.int32)
    return mixed_idx, focus_idx, ctx_idx, lengths, focus_lens, ctx_lens, f_total


# ----------------------------------------------------------------------------
# Encoder.forward
# ----------------------------------------------------------------------------
def encoder_forward(params, inputs, focus_num_of_paths, before_ctx_num_of_paths,
                    after_ctx_num_of_paths, num_layers, h_dim):
    hp = params["split_token"].shape[1]                       # lane-dense hidden

    encoded_path = path_encoder(params, *inputs)              # (T, Hp) f32

    (mixed_idx, focus_idx, ctx_idx, lengths, focus_lens, ctx_lens,
     f_total) = build_index_tables(focus_num_of_paths, before_ctx_num_of_paths,
                                   after_ctx_num_of_paths)

    # OperationMix on the contiguous prefix of valid focus rows only
    # (skips all padded rows; no post-hoc mask pass).
    # TODO(synk): exact OperationMix internals are not in the provided source;
    # modeled as linear+tanh on each valid timestep.
    mixed_rows = linear_tanh(encoded_path, params["mix_w"], params["mix_b"],
                             n_rows=f_total)                  # (F, Hp)

    zero = jnp.zeros((1, hp), jnp.float32)
    aug = jnp.concatenate([encoded_path, params["split_token"], zero], axis=0)
    mix_tbl = jnp.concatenate([mixed_rows, zero], axis=0)     # (F+1, Hp)

    # Fused: pack_sequence(focus)->OperationMix padded output, ctx padded output
    # (before ++ split_token ++ after), and h = (sum focus + sum ctx)/lengths.
    mixed_padded, ctx_padded, h_pool = gather_mix_ctx_pool(
        aug, mix_tbl,
        jnp.asarray(mixed_idx), jnp.asarray(focus_idx),
        jnp.asarray(ctx_idx), jnp.asarray(lengths))

    # Slice the lane-padded hidden back to the logical h_dim once, at the exit.
    mixed_padded = mixed_padded[..., :h_dim]
    ctx_padded = ctx_padded[..., :h_dim]
    h = jnp.tile(h_pool[:, :h_dim][None], (num_layers, 1, 1))  # (num_layers, B, h)

    packed_mixed_encoded_path = (mixed_padded, jnp.asarray(focus_lens))
    packed_encoded_ctx = (ctx_padded, jnp.asarray(ctx_lens))
    return packed_mixed_encoded_path, packed_encoded_ctx, h


# ----------------------------------------------------------------------------
# Deterministic parameter / input construction
# ----------------------------------------------------------------------------
def xavier_uniform(key, shape):
    fan_in, fan_out = shape[0], shape[1]
    bound = float(np.sqrt(6.0 / (fan_in + fan_out)))
    return jax.random.uniform(key, shape, jnp.float32, -bound, bound)


def make_params(key, path_vocab, src_tgt_vocab, pos_vocab, in_dim, h_dim):
    hp = _round_up(h_dim, LANE)          # lane-dense hidden dim
    ks = jax.random.split(key, 8)
    zero_row = lambda e: e.at[0].set(0.0)                     # padding_idx = 0

    proj_w = jnp.zeros((3 * in_dim, hp), jnp.float32).at[:, :h_dim].set(
        xavier_uniform(ks[3], (3 * in_dim, h_dim)))
    mix_w = jnp.zeros((hp, hp), jnp.float32).at[:h_dim, :h_dim].set(
        xavier_uniform(ks[4], (h_dim, h_dim)))
    split_token = jnp.zeros((1, hp), jnp.float32).at[:, :h_dim].set(
        xavier_uniform(ks[5], (1, h_dim)))

    return {
        "path_emb": zero_row(0.1 * jax.random.normal(ks[0], (path_vocab, in_dim))),
        "src_tgt_emb": zero_row(0.1 * jax.random.normal(ks[1], (src_tgt_vocab, in_dim))),
        "pos_emb": zero_row(0.1 * jax.random.normal(ks[2], (pos_vocab, in_dim))),
        "path_proj_w": proj_w,
        "path_proj_b": jnp.zeros((hp,), jnp.float32),
        "mix_w": mix_w,
        "mix_b": jnp.zeros((hp,), jnp.float32),
        "split_token": split_token,
    }


def make_token_batch(key, n, max_len, vocab, pos_vocab):
    k1, k2, k3 = jax.random.split(key, 3)
    lens = jax.random.randint(k1, (n,), 1, max_len + 1)
    tok = jax.random.randint(k2, (n, max_len), 1, vocab)
    pos = jax.random.randint(k3, (n, max_len), 1, pos_vocab)
    mask = jnp.arange(max_len)[None, :] < lens[:, None]
    return jnp.where(mask, tok, 0), jnp.where(mask, pos, 0), lens


if __name__ == "__main__":
    # small shapes
    B = 2
    in_dim, h_dim, num_layers = 16, 32, 2
    path_vocab, src_tgt_vocab, pos_vocab = 20, 30, 10
    src_len, tgt_len, path_len = 5, 5, 7

    focus_num_of_paths = [3, 2]
    before_ctx_num_of_paths = [2, 3]
    after_ctx_num_of_paths = [1, 2]
    total_paths = sum(focus_num_of_paths + before_ctx_num_of_paths
                      + after_ctx_num_of_paths)               # 13

    key = jax.random.PRNGKey(0)
    kp, ks, kt, kq = jax.random.split(key, 4)
    params = make_params(kp, path_vocab, src_tgt_vocab, pos_vocab, in_dim, h_dim)

    srcs, srcs_pos, src_lens = make_token_batch(ks, total_paths, src_len,
                                                src_tgt_vocab, pos_vocab)
    tgts, tgts_pos, tgt_lens = make_token_batch(kt, total_paths, tgt_len,
                                                src_tgt_vocab, pos_vocab)
    paths, paths_pos, p_lens = make_token_batch(kq, total_paths, path_len,
                                                path_vocab, pos_vocab)
    inputs = (srcs, srcs_pos, src_lens, tgts, tgts_pos, tgt_lens,
              paths, paths_pos, p_lens)

    (mixed_padded, mixed_lens), (ctx_padded, ctx_lens), h = encoder_forward(
        params, inputs, focus_num_of_paths, before_ctx_num_of_paths,
        after_ctx_num_of_paths, num_layers, h_dim)

    jax.block_until_ready((mixed_padded, ctx_padded, h))
    assert mixed_padded.shape == (B, max(focus_num_of_paths), h_dim)
    assert ctx_padded.shape == (B, max(b + 1 + a for b, a in
                                       zip(before_ctx_num_of_paths,
                                           after_ctx_num_of_paths)), h_dim)
    assert h.shape == (num_layers, B, h_dim)
    assert bool(jnp.all(jnp.isfinite(h)))
    assert bool(jnp.all(jnp.isfinite(mixed_padded)))
    assert bool(jnp.all(jnp.isfinite(ctx_padded)))
    print("KERNEL_OK")
</pallas_src>

<mosaic_0001>
module attributes {stable_mosaic.version = 11 : i64} {
  func.func @_linear_tanh_kernel(%arg0: i32, %arg1: memref<16x48xf32, #tpu.memory_space<vmem>>, %arg2: memref<48x128xbf16, #tpu.memory_space<vmem>>, %arg3: memref<1x128xf32, #tpu.memory_space<vmem>>, %arg4: memref<16x128xf32, #tpu.memory_space<vmem>>) attributes {dimension_semantics = [#tpu.dimension_semantics<parallel>], iteration_bounds = array<i64: 1>, scalar_prefetch = 0 : i64, scratch_operands = 0 : i64, tpu.core_type = #tpu.core_type<tc>, window_params = [{transform_indices = @transform_0, window_bounds = array<i64: 16, 48>}, {pipeline_mode = #tpu.pipeline_mode<synchronous>, transform_indices = @transform_1, window_bounds = array<i64: 48, 128>}, {pipeline_mode = #tpu.pipeline_mode<synchronous>, transform_indices = @transform_2, window_bounds = array<i64: 1, 128>}, {transform_indices = @transform_3, window_bounds = array<i64: 16, 128>}]} {
    %c0 = arith.constant 0 : index
    %c0_0 = arith.constant 0 : index
    %0 = vector.load %arg1[%c0, %c0_0] : memref<16x48xf32, #tpu.memory_space<vmem>>, vector<16x48xf32>
    %1 = arith.truncf %0 : vector<16x48xf32> to vector<16x48xbf16>
    %c0_1 = arith.constant 0 : index
    %c0_2 = arith.constant 0 : index
    %2 = vector.load %arg2[%c0_1, %c0_2] : memref<48x128xbf16, #tpu.memory_space<vmem>>, vector<48x128xbf16>
    %cst = arith.constant dense<0.000000e+00> : vector<16x128xf32>
    %3 = tpu.matmul %1, %2, %cst {dimension_numbers = #tpu.dot_dimension_numbers<[1], [0], [0], [1], [0, 0, 1, 1], [], []>} : vector<16x48xbf16>, vector<48x128xbf16>, vector<16x128xf32> -> vector<16x128xf32>
    %c0_3 = arith.constant 0 : index
    %c0_4 = arith.constant 0 : index
    %4 = vector.load %arg3[%c0_3, %c0_4] : memref<1x128xf32, #tpu.memory_space<vmem>>, vector<1x128xf32>
    %5 = vector.broadcast %4 : vector<1x128xf32> to vector<16x128xf32>
    %6 = arith.addf %3, %5 : vector<16x128xf32>
    %7 = math.tanh %6 : vector<16x128xf32>
    %c0_5 = arith.constant 0 : index
    %c0_6 = arith.constant 0 : index
    %8 = vector.load %arg4[%c0_5, %c0_6] : memref<16x128xf32, #tpu.memory_space<vmem>>, vector<16x128xf32>
    tpu.vector_store %arg4[%c0_5, %c0_6], %7 {strides = array<i32>} : memref<16x128xf32, #tpu.memory_space<vmem>>, vector<16x128xf32>,
    return
  }
  func.func @transform_0(%arg0: i32) -> (i32, i32) {
    %c0_i32 = arith.constant 0 : i32
    %c0_i32_0 = arith.constant 0 : i32
    return %arg0, %c0_i32 : i32, i32
  }
  func.func @transform_1(%arg0: i32) -> (i32, i32) {
    %c0_i32 = arith.constant 0 : i32
    %c0_i32_0 = arith.constant 0 : i32
    %c0_i32_1 = arith.constant 0 : i32
    return %c0_i32, %c0_i32_0 : i32, i32
  }
  func.func @transform_2(%arg0: i32) -> (i32, i32) {
    %c0_i32 = arith.constant 0 : i32
    %c0_i32_0 = arith.constant 0 : i32
    %c0_i32_1 = arith.constant 0 : i32
    return %c0_i32, %c0_i32_0 : i32, i32
  }
  func.func @transform_3(%arg0: i32) -> (i32, i32) {
    %c0_i32 = arith.constant 0 : i32
    %c0_i32_0 = arith.constant 0 : i32
    return %arg0, %c0_i32 : i32, i32
  }
}

</mosaic_0001>

<llo_original>
// kernel: tpu_custom_call.1
$region0: #{tpu_custom_call.1}
  #allocation0 [shape = 'u32[]', space=smem, size = 0x4, offset = 0x4, fixed_abs, tag = 'smem constant byte address 0x4 - core index']
  #allocation1 [shape = 'u32[144,128]{1,0:T(1,128)}', space=vmem, size = 0x12000, scoped, tag = 'internal scratch']
  %s0 = inlined_call_operand.hbm [shape: f32[13,48], index: 0, kind: input, shape index: {}]
  %s1 = inlined_call_operand.hbm [shape: bf16[48,128], index: 1, kind: input, shape index: {}]
  %s2 = inlined_call_operand.vmem [shape: f32[1,128], index: 2, kind: input, shape index: {}]
  %s3 = inlined_call_operand.hbm [shape: f32[13,128], index: 3, kind: output, shape index: {}]
  %s4 = sld [smem:[#allocation0]]
  $region30: #{tpu_custom_call.1} parent=0
    _
  %s6 = ssub.s32 1, %s4
  %s7 = scalar_select 0, %s6, %s4
  $region1: #{tpu_custom_call.1} parent=0
    #allocation2 [shape = 'u8[8192]{0}', space=vmem, size = 0x2000, scoped, tag = 'input window, operand 0, single buffered']
    #allocation3 [shape = 's32[1]{0}', space=sflag, size = 0x4, scoped, tag = 'scoped memory for tpu_custom_call.1']
    #allocation4 [shape = 's32[1]{0}', space=sflag, size = 0x4, scoped, tag = 'scoped memory for tpu_custom_call.1']
    #allocation5 [shape = 'u8[12288]{0}', space=vmem, size = 0x3000, scoped, tag = 'input window, operand 1, single buffered']
    #allocation6 [shape = 's32[1]{0}', space=sflag, size = 0x4, scoped, tag = 'scoped memory for tpu_custom_call.1']
    #allocation7 [shape = 'u8[8192]{0}', space=vmem, size = 0x2000, scoped, tag = 'output window, operand 0, single buffered']
    %8 = vsyncpa [#allocation3], 0
    %9 = vsyncpa [#allocation6], 0
    %10 = vsyncpa [#allocation4], 0
    // Predicated region
    $region2: #{tpu_custom_call.1} parent=1 // pred_check
      _
    $region3: #{tpu_custom_call.1} parent=1 // pred_check_branch
      %12 = sbr.rel (0) target = $region5
    $region4: #{tpu_custom_call.1} parent=1 // pred_region
      %s14 = ssub.s32 256, 256
      %15 = vsyncadd [#allocation3], %s14
      %s16 = sshll.u32 [#allocation2], 4
      %s17 = int_to_ptr.vmem [resolvable:$true] %s16
      %22 = dma.hbm_to_vmem [thread:$0]  %s0, 256, %s17, [#allocation3], 128, 128, 8
    $region5: #{tpu_custom_call.1} parent=1 // pred_fallthru
      _
    // Predicated region
    $region6: #{tpu_custom_call.1} parent=1 // pred_check
      _
    $region7: #{tpu_custom_call.1} parent=1 // pred_check_branch
      %24 = sbr.rel (0) target = $region9
    $region8: #{tpu_custom_call.1} parent=1 // pred_region
      %s26 = ssub.s32 384, 384
      %27 = vsyncadd [#allocation6], %s26
      %s28 = sshll.u32 [#allocation5], 4
      %s29 = int_to_ptr.vmem [resolvable:$true] %s28
      %34 = dma.hbm_to_vmem [thread:$0]  %s1, 384, %s29, [#allocation6], 64, 64, 4
    $region9: #{tpu_custom_call.1} parent=1 // pred_fallthru
      _
    // Predicated region
    $region10: #{tpu_custom_call.1} parent=1 // pred_check
      _
    $region11: #{tpu_custom_call.1} parent=1 // pred_check_branch
      %36 = sbr.rel (0) target = $region13
    $region12: #{tpu_custom_call.1} parent=1 // pred_region
      _
    $region13: #{tpu_custom_call.1} parent=1 // pred_fallthru
      _
    // Predicated region
    $region14: #{tpu_custom_call.1} parent=1 // pred_check
      _
    $region15: #{tpu_custom_call.1} parent=1 // pred_check_branch
      %38 = sbr.rel (0) target = $region17
    $region16: #{tpu_custom_call.1} parent=1 // pred_region
      %39 = dma.done [#allocation3], 256
    $region17: #{tpu_custom_call.1} parent=1 // pred_fallthru
      _
    // Predicated region
    $region18: #{tpu_custom_call.1} parent=1 // pred_check
      _
    $region19: #{tpu_custom_call.1} parent=1 // pred_check_branch
      %41 = sbr.rel (0) target = $region21
    $region20: #{tpu_custom_call.1} parent=1 // pred_region
      %42 = dma.done [#allocation6], 384
    $region21: #{tpu_custom_call.1} parent=1 // pred_fallthru
      _
    %v44 = vld [vmem:[#allocation2] sm:$0xff]
    %v45 = vld [vmem:[#allocation2 + $0x8] sm:$0xff]
    %v46 = vpack.c.bf16 %v45, %v44
    %v47 = vld [vmem:[#allocation5] sm:$0xf]
    %v48 = vld [vmem:[#allocation5 + $0x4] sm:$0xf]
    %v49 = vld [vmem:[#allocation5 + $0x8] sm:$0xf]
    %v50 = vld [vmem:[#allocation5 + $0xc] sm:$0xf]
    %v51 = vld [vmem:[#allocation5 + $0x10] sm:$0xf]
    %v52 = vld [vmem:[#allocation5 + $0x14] sm:$0xf]
    %v53 = vld [vmem:[%s2] sm:$0x1]
    %v55 = vlaneseq
    %v56 = vshrl.u32 %v55, 7
    %v57 = vsub.s32 0, %v56
    %v58 = vrot.slane %v53, %v57
    %v66 = vunpack.c.l.b16 %v47
    %v67 = vunpack.c.l.b16 %v48
    %v68 = vunpack.c.l.b16 %v49
    %v69 = vunpack.c.l.b16 %v50
    %v70 = vunpack.c.l.b16 %v51
    %v71 = vunpack.c.l.b16 %v52
    %v72 = vpack.c.b16 %v67, %v66
    %v73 = vpack.c.b16 %v69, %v68
    %v74 = vpack.c.b16 %v71, %v70
    %vm78 = vcmask 392192
    %v80 = vsel %vm78, %v46, 0
    %82 = vmatprep.subr.bf16.mxu0 0
    %83 = vmatpush1.bf16.msra.mxu0 %v72
    %84 = vmatprep.subr.bf16.mxu0 0
    %85 = vmatpush1.bf16.msra.mxu0 %v73
    %86 = vmatprep.subr.bf16.mxu0 0
    %87 = vmatpush1.bf16.msra.mxu0 %v74
    %88 = vmatprep.subr.bf16.mxu0 0
    %89 = vmatpush1.bf16.msra.mxu0 0
    %90 = vmatprep.subr.bf16.mxu0 0
    %91 = vmatpush1.bf16.msra.mxu0 0
    %92 = vmatprep.subr.bf16.mxu0 0
    %93 = vmatpush1.bf16.msra.mxu0 0
    %94 = vmatprep.subr.bf16.mxu0 0
    %95 = vmatpush1.bf16.msra.mxu0 0
    %96 = vmatprep.subr.bf16.mxu0 0
    %97 = vmatpush1.bf16.msra.mxu0 0
    %98 = vmatprep.subr.bf16.mxu0 0
    %99 = vmatpush1.bf16.msra.mxu0 0
    %100 = vmatprep.subr.bf16.mxu0 0
    %101 = vmatpush1.bf16.msra.mxu0 0
    %102 = vmatprep.subr.bf16.mxu0 0
    %103 = vmatpush1.bf16.msra.mxu0 0
    %104 = vmatprep.subr.bf16.mxu0 0
    %105 = vmatpush1.bf16.msra.mxu0 0
    %106 = vmatprep.subr.bf16.mxu0 0
    %107 = vmatpush1.bf16.msra.mxu0 0
    %108 = vmatprep.subr.bf16.mxu0 0
    %109 = vmatpush1.bf16.msra.mxu0 0
    %110 = vmatprep.subr.bf16.mxu0 0
    %111 = vmatpush1.bf16.msra.mxu0 0
    %112 = vmatprep.subr.bf16.mxu0 0
    %113 = vmatpush1.bf16.msra.mxu0 0
    %114 = vmatprep.mubr.bf16.mxu0 0
    %115 = vmatmul.mubr.bf16.gmra.mrb[0].mxu0 %v80
    %v116 = vpop.f32.mrb[0].mxu0
    %v117 = vadd.f32 %v58, %v116
    %v118 = vpop.f32.mrb[0].mxu0
    %v119 = vpop.f32.mrb[0].mxu0
    %v120 = vadd.f32 %v58, %v119
    %v121 = vpop.f32.mrb[0].mxu0
    %122 = vdwg.mxu0
    %v123 = vtanh.pop %v117
    %v124 = vtanh.pop %v120
    %125 = vst [vmem:[#allocation7] sm:$0xff] %v123
    %126 = vst [vmem:[#allocation7 + $0x8] sm:$0xff] %v124
    // Predicated region
    $region22: #{tpu_custom_call.1} parent=1 // pred_check
      _
    $region23: #{tpu_custom_call.1} parent=1 // pred_check_branch
      %128 = sbr.rel (0) target = $region25
    $region24: #{tpu_custom_call.1} parent=1 // pred_region
      %s130 = ssub.s32 256, 256
      %131 = vsyncadd [#allocation4], %s130
      %s132 = sshll.u32 [#allocation7], 4
      %s133 = int_to_ptr.vmem [resolvable:$true] %s132
      %138 = dma.vmem_to_hbm [thread:$0]  %s133, 256, %s3, [#allocation4], 128, 128, 8
    $region25: #{tpu_custom_call.1} parent=1 // pred_fallthru
      _
    // Predicated region
    $region26: #{tpu_custom_call.1} parent=1 // pred_check
      _
    $region27: #{tpu_custom_call.1} parent=1 // pred_check_branch
      %140 = sbr.rel (0) target = $region29
    $region28: #{tpu_custom_call.1} parent=1 // pred_region
      %141 = dma.done [#allocation4], 256
    $region29: #{tpu_custom_call.1} parent=1 // pred_fallthru
      _
    %142 = vsyncpa [#allocation3], 1
    %143 = vsyncpa [#allocation6], 1
    %144 = vsyncpa [#allocation4], 1

</llo_original>
